<compile_context>
chip_gen: v5e
topology: v5e:2x2
jax: 0.10.0
libtpu: 0.0.40
codegen_flags: <defaults>
</compile_context>

<pallas_src>
import functools

import jax
import jax.numpy as jnp
from jax.experimental import pallas as pl
from jax.experimental.pallas import tpu as pltpu

HIDDEN = 512                       # fixed by the module definition
SUBLANE_BF16 = 16                  # bf16 sublane packing granularity
MAX_TB = 2048                      # max batch-tile rows (multiple of 16)
FAST_PATH_B = 64                   # below this, launch/pad overhead dominates
VMEM_SOFT_CAP = 48 * 1024 * 1024   # stay well under v7x's 64 MiB per-TC VMEM


def _round_up(x, m):
    return ((x + m - 1) // m) * m


def _cdiv(a, b):
    return -(-a // b)


def _infer_act_dtype():
    # bf16 activations (bias add + tanh) on v6e/v7x; f32 on v5e and older,
    # whose VPU/EUP have no bf16 path.
    try:
        kind = jax.devices()[0].device_kind.lower()
    except Exception:
        return jnp.float32
    for tag in ("v2", "v3", "v4", "v5"):
        if tag in kind:
            return jnp.float32
    return jnp.bfloat16


_ACT_DTYPE = _infer_act_dtype()


def _mlp_kernel(x_ref, w1_ref, b1_ref, w2_ref, b2_ref, o_ref, *, act_dtype):
    # Cast x to bf16 in-VMEM (VPU) so the HBM stream stays in the caller dtype
    # and the MXU runs the bf16 path with f32 accumulation.
    x = x_ref[...].astype(jnp.bfloat16)
    h = jnp.dot(x, w1_ref[...], preferred_element_type=jnp.float32)
    # Bias + tanh in act_dtype: bf16 on v6e/v7x (halves EUP work), f32 on v5e.
    h = jnp.tanh(h.astype(act_dtype) + b1_ref[...])
    out = jnp.dot(h.astype(jnp.bfloat16), w2_ref[...],
                  preferred_element_type=jnp.float32)
    o_ref[...] = (out + b2_ref[...]).astype(o_ref.dtype)


def _mlp_dense(x, w1, b1, w2, b2):
    # Plain XLA path with the same numerics as the kernel (fast path / fallback).
    h = jnp.dot(x.astype(jnp.bfloat16), w1, preferred_element_type=jnp.float32)
    h = jnp.tanh(h.astype(_ACT_DTYPE) + b1)
    out = jnp.dot(h.astype(jnp.bfloat16), w2, preferred_element_type=jnp.float32)
    return out + b2


@jax.jit
def dqn_forward(x, w1, b1, w2, b2):
    B, in_dim = x.shape
    out_dim = w2.shape[1]

    # No-op casts if the caller already passed prepared (kernel-dtype) params.
    w1 = w1.astype(jnp.bfloat16)
    w2 = w2.astype(jnp.bfloat16)
    b1 = jnp.reshape(b1, (1, HIDDEN)).astype(_ACT_DTYPE)
    b2 = jnp.reshape(b2, (1, out_dim)).astype(jnp.float32)

    # Tile selection: equal-sized, 16-aligned tiles that minimize batch padding.
    nt = _cdiv(B, MAX_TB)
    if nt == 1 and B >= 128:
        nt = 2  # >=2 grid steps so v7x's two TensorCores both get work.
    tb = _round_up(_cdiv(B, nt), SUBLANE_BF16)
    b_pad = nt * tb

    x_bytes = x.dtype.itemsize
    act_bytes = jnp.dtype(_ACT_DTYPE).itemsize
    vmem_needed = (
        2 * tb * in_dim * x_bytes          # double-buffered x tiles
        + 2 * tb * out_dim * 4             # double-buffered out tiles (f32)
        + 2 * in_dim * HIDDEN * 2          # w1 (bf16, default-buffered)
        + 2 * HIDDEN * out_dim * 2         # w2
        + 2 * (HIDDEN * act_bytes + out_dim * 4)  # biases
        + tb * HIDDEN * (4 + 2)            # f32 hidden acc + bf16 copy
    )

    if B < FAST_PATH_B or vmem_needed > VMEM_SOFT_CAP:
        # TODO(synk): add a K-tiled (input_dim) variant with an f32 accumulator
        # + pl.when init/finalize for very large input_dim instead of falling
        # back to the XLA path.
        return _mlp_dense(x, w1, b1, w2, b2)

    if b_pad != B:
        x = jnp.pad(x, ((0, b_pad - B), (0, 0)))

    kernel = functools.partial(_mlp_kernel, act_dtype=_ACT_DTYPE)

    flops = 2 * b_pad * (in_dim * HIDDEN + HIDDEN * out_dim)
    transcendentals = b_pad * HIDDEN
    bytes_accessed = (b_pad * in_dim * x_bytes      # x
                      + in_dim * HIDDEN * 2          # w1 (bf16)
                      + HIDDEN * out_dim * 2         # w2 (bf16)
                      + HIDDEN * act_bytes + out_dim * 4   # biases
                      + b_pad * out_dim * 4)         # output (f32)

    vmem_limit = vmem_needed + (8 << 20)   # working set + modest slack, no floor

    out = pl.pallas_call(
        kernel,
        out_shape=jax.ShapeDtypeStruct((b_pad, out_dim), jnp.float32),
        grid=(nt,),
        in_specs=[
            pl.BlockSpec((tb, in_dim), lambda i: (i, 0)),      # x tile
            pl.BlockSpec((in_dim, HIDDEN), lambda i: (0, 0)),  # w1 (resident)
            pl.BlockSpec((1, HIDDEN), lambda i: (0, 0)),       # b1 (resident)
            pl.BlockSpec((HIDDEN, out_dim), lambda i: (0, 0)), # w2 (resident)
            pl.BlockSpec((1, out_dim), lambda i: (0, 0)),      # b2 (resident)
        ],
        out_specs=pl.BlockSpec((tb, out_dim), lambda i: (i, 0)),
        compiler_params=pltpu.CompilerParams(
            dimension_semantics=("parallel",),
            vmem_limit_bytes=vmem_limit),
        cost_estimate=pl.CostEstimate(
            flops=flops,
            transcendentals=transcendentals,
            bytes_accessed=bytes_accessed),
    )(x, w1, b1, w2, b2)

    if b_pad != B:
        out = out[:B]
    return out


def init_params(key, input_dim, output_dim):
    k1, k2, k3, k4 = jax.random.split(key, 4)
    # Deterministic synthetic init (uniform, like PyTorch's default fan-in scheme).
    lim1 = 1.0 / jnp.sqrt(input_dim)
    lim2 = 1.0 / jnp.sqrt(HIDDEN)
    w1 = jax.random.uniform(k1, (input_dim, HIDDEN), jnp.float32, -lim1, lim1)
    b1 = jax.random.uniform(k2, (1, HIDDEN), jnp.float32, -lim1, lim1)
    w2 = jax.random.uniform(k3, (HIDDEN, output_dim), jnp.float32, -lim2, lim2)
    b2 = jax.random.uniform(k4, (1, output_dim), jnp.float32, -lim2, lim2)
    return w1, b1, w2, b2


def prepare_params(w1, b1, w2, b2):
    # One-time cast to the kernel dtypes (takes per-call casts off the hot path).
    out_dim = w2.shape[1]
    return (w1.astype(jnp.bfloat16),
            jnp.reshape(b1, (1, HIDDEN)).astype(_ACT_DTYPE),
            w2.astype(jnp.bfloat16),
            jnp.reshape(b2, (1, out_dim)).astype(jnp.float32))


def reference_forward(x, w1, b1, w2, b2):
    # Pure f32 reference of the PyTorch module.
    return jnp.tanh(x @ w1 + b1) @ w2 + b2


if __name__ == "__main__":
    input_dim, output_dim = 32, 8

    key = jax.random.PRNGKey(0)
    kx1, kx2, kp = jax.random.split(key, 3)

    w1, b1, w2, b2 = init_params(kp, input_dim, output_dim)        # f32 masters
    pw1, pb1, pw2, pb2 = prepare_params(w1, b1, w2, b2)            # kernel dtypes

    # Large batch -> Pallas path (2 batch tiles of 128 rows, megacore-friendly).
    x_big = jax.random.normal(kx1, (256, input_dim), jnp.float32)
    out_big = jax.block_until_ready(dqn_forward(x_big, pw1, pb1, pw2, pb2))
    ref_big = reference_forward(x_big, w1, b1, w2, b2)
    assert out_big.shape == (256, output_dim)
    assert jnp.allclose(out_big, ref_big, atol=3e-2, rtol=3e-2), \
        "Pallas path mismatch vs JAX reference"

    # Small batch -> XLA fast path (single-state action selection regime).
    x_small = jax.random.normal(kx2, (8, input_dim), jnp.float32)
    out_small = jax.block_until_ready(dqn_forward(x_small, pw1, pb1, pw2, pb2))
    ref_small = reference_forward(x_small, w1, b1, w2, b2)
    assert out_small.shape == (8, output_dim)
    assert jnp.allclose(out_small, ref_small, atol=3e-2, rtol=3e-2), \
        "fast path mismatch vs JAX reference"

    print("KERNEL_OK")
</pallas_src>

<mosaic_0001>
module attributes {stable_mosaic.version = 11 : i64} {
  func.func @_mlp_kernel(%arg0: i32, %arg1: memref<128x32xf32, #tpu.memory_space<vmem>>, %arg2: memref<32x512xbf16, #tpu.memory_space<vmem>>, %arg3: memref<1x512xbf16, #tpu.memory_space<vmem>>, %arg4: memref<512x8xbf16, #tpu.memory_space<vmem>>, %arg5: memref<1x8xf32, #tpu.memory_space<vmem>>, %arg6: memref<128x8xf32, #tpu.memory_space<vmem>>) attributes {dimension_semantics = [#tpu.dimension_semantics<parallel>], iteration_bounds = array<i64: 2>, scalar_prefetch = 0 : i64, scratch_operands = 0 : i64, tpu.core_type = #tpu.core_type<tc>, window_params = [{transform_indices = @transform_0, window_bounds = array<i64: 128, 32>}, {pipeline_mode = #tpu.pipeline_mode<synchronous>, transform_indices = @transform_1, window_bounds = array<i64: 32, 512>}, {pipeline_mode = #tpu.pipeline_mode<synchronous>, transform_indices = @transform_2, window_bounds = array<i64: 1, 512>}, {pipeline_mode = #tpu.pipeline_mode<synchronous>, transform_indices = @transform_3, window_bounds = array<i64: 512, 8>}, {pipeline_mode = #tpu.pipeline_mode<synchronous>, transform_indices = @transform_4, window_bounds = array<i64: 1, 8>}, {transform_indices = @transform_5, window_bounds = array<i64: 128, 8>}]} {
    %c0 = arith.constant 0 : index
    %c0_0 = arith.constant 0 : index
    %0 = vector.load %arg1[%c0, %c0_0] : memref<128x32xf32, #tpu.memory_space<vmem>>, vector<128x32xf32>
    %1 = arith.truncf %0 : vector<128x32xf32> to vector<128x32xbf16>
    %c0_1 = arith.constant 0 : index
    %c0_2 = arith.constant 0 : index
    %2 = vector.load %arg2[%c0_1, %c0_2] : memref<32x512xbf16, #tpu.memory_space<vmem>>, vector<32x512xbf16>
    %cst = arith.constant dense<0.000000e+00> : vector<128x512xf32>
    %3 = tpu.matmul %1, %2, %cst {dimension_numbers = #tpu.dot_dimension_numbers<[1], [0], [0], [1], [0, 0, 1, 1], [], []>} : vector<128x32xbf16>, vector<32x512xbf16>, vector<128x512xf32> -> vector<128x512xf32>
    %4 = arith.truncf %3 : vector<128x512xf32> to vector<128x512xbf16>
    %c0_3 = arith.constant 0 : index
    %c0_4 = arith.constant 0 : index
    %5 = vector.load %arg3[%c0_3, %c0_4] : memref<1x512xbf16, #tpu.memory_space<vmem>>, vector<1x512xbf16>
    %6 = vector.broadcast %5 : vector<1x512xbf16> to vector<128x512xbf16>
    %7 = arith.addf %4, %6 : vector<128x512xbf16>
    %8 = math.tanh %7 : vector<128x512xbf16>
    %c0_5 = arith.constant 0 : index
    %c0_6 = arith.constant 0 : index
    %9 = vector.load %arg4[%c0_5, %c0_6] : memref<512x8xbf16, #tpu.memory_space<vmem>>, vector<512x8xbf16>
    %cst_7 = arith.constant dense<0.000000e+00> : vector<128x8xf32>
    %10 = tpu.matmul %8, %9, %cst_7 {dimension_numbers = #tpu.dot_dimension_numbers<[1], [0], [0], [1], [0, 0, 1, 1], [], []>} : vector<128x512xbf16>, vector<512x8xbf16>, vector<128x8xf32> -> vector<128x8xf32>
    %c0_8 = arith.constant 0 : index
    %c0_9 = arith.constant 0 : index
    %11 = vector.load %arg5[%c0_8, %c0_9] : memref<1x8xf32, #tpu.memory_space<vmem>>, vector<1x8xf32>
    %12 = vector.broadcast %11 : vector<1x8xf32> to vector<128x8xf32>
    %13 = arith.addf %10, %12 : vector<128x8xf32>
    %c0_10 = arith.constant 0 : index
    %c0_11 = arith.constant 0 : index
    %14 = vector.load %arg6[%c0_10, %c0_11] : memref<128x8xf32, #tpu.memory_space<vmem>>, vector<128x8xf32>
    tpu.vector_store %arg6[%c0_10, %c0_11], %13 {strides = array<i32>} : memref<128x8xf32, #tpu.memory_space<vmem>>, vector<128x8xf32>,
    return
  }
  func.func @transform_0(%arg0: i32) -> (i32, i32) {
    %c0_i32 = arith.constant 0 : i32
    %c0_i32_0 = arith.constant 0 : i32
    return %arg0, %c0_i32 : i32, i32
  }
  func.func @transform_1(%arg0: i32) -> (i32, i32) {
    %c0_i32 = arith.constant 0 : i32
    %c0_i32_0 = arith.constant 0 : i32
    %c0_i32_1 = arith.constant 0 : i32
    return %c0_i32, %c0_i32_0 : i32, i32
  }
  func.func @transform_2(%arg0: i32) -> (i32, i32) {
    %c0_i32 = arith.constant 0 : i32
    %c0_i32_0 = arith.constant 0 : i32
    %c0_i32_1 = arith.constant 0 : i32
    return %c0_i32, %c0_i32_0 : i32, i32
  }
  func.func @transform_3(%arg0: i32) -> (i32, i32) {
    %c0_i32 = arith.constant 0 : i32
    %c0_i32_0 = arith.constant 0 : i32
    %c0_i32_1 = arith.constant 0 : i32
    return %c0_i32, %c0_i32_0 : i32, i32
  }
  func.func @transform_4(%arg0: i32) -> (i32, i32) {
    %c0_i32 = arith.constant 0 : i32
    %c0_i32_0 = arith.constant 0 : i32
    %c0_i32_1 = arith.constant 0 : i32
    return %c0_i32, %c0_i32_0 : i32, i32
  }
  func.func @transform_5(%arg0: i32) -> (i32, i32) {
    %c0_i32 = arith.constant 0 : i32
    %c0_i32_0 = arith.constant 0 : i32
    return %arg0, %c0_i32 : i32, i32
  }
}

</mosaic_0001>

<llo_original>
// kernel: dqn_forward.1
$region0: #{dqn_forward.1}
  #allocation0 [shape = 'u32[]', space=smem, size = 0x4, offset = 0x4, fixed_abs, tag = 'smem constant byte address 0x4 - core index']
  #allocation1 [shape = 'u32[72,128]{1,0:T(1,128)}', space=vmem, size = 0x9000, scoped, tag = 'internal scratch']
  %s0 = inlined_call_operand.vmem [shape: f32[256,32], index: 0, kind: input, shape index: {}]
  %s1 = inlined_call_operand.vmem [shape: bf16[32,512], index: 1, kind: input, shape index: {}]
  %s2 = inlined_call_operand.vmem [shape: bf16[1,512], index: 2, kind: input, shape index: {}]
  %s3 = inlined_call_operand.vmem [shape: bf16[512,8], index: 3, kind: input, shape index: {}]
  %s4 = inlined_call_operand.vmem [shape: f32[1,8], index: 4, kind: input, shape index: {}]
  %s5 = inlined_call_operand.vmem [shape: f32[256,8], index: 5, kind: output, shape index: {}]
  %s6 = sld [smem:[#allocation0]]
  $region53: #{dqn_forward.1} parent=0
    _
  %s8 = ssub.s32 1, %s6
  %s9 = scalar_select 0, %s8, %s6
  loop: start=0, step=1, limit=4
  $region2: #{dqn_forward.1} parent=0 // loop_pre_header
    _
  $region3: #{dqn_forward.1} parent=0 // loop_header
    %s11 = sphi 0, %s15
    %p12 = scmp.ge.s32.totalorder %s11, 4
    %s21 = sphi 0, %s23
    %s24 = sphi 0, %s21
    %s25 = sphi 0, %s24
    %s41 = sphi 0, %s25
    %s45 = sphi 0, %s45
    %s47 = sphi 0, %s45
    %s48 = sphi 0, %s47
    %s62 = sphi 0, %s48
    %s66 = sphi 0, %s66
    %s68 = sphi 0, %s66
    %s69 = sphi 0, %s68
    %s83 = sphi 0, %s69
    %s87 = sphi 0, %s87
    %s89 = sphi 0, %s87
    %s90 = sphi 0, %s89
    %s104 = sphi 0, %s90
    %s108 = sphi 0, %s108
    %s110 = sphi 0, %s108
    %s111 = sphi 0, %s110
    %s125 = sphi 0, %s111
    %s131 = sphi 0, %s133
    %s134 = sphi 0, %s131
    %s135 = sphi 0, %s134
    %s151 = sphi 0, %s135
  $region4: #{dqn_forward.1} parent=0 // loop_header_branch
    %14 = sbr.rel (%p12) target = $region8
  $region5: #{dqn_forward.1} parent=0 // loop_body
    %s16 = ssub.s32 %s11, 1
    %s17 = ssub.s32 %s11, 2
    %s18 = sadd.s32 %s11, 1
    %s19 = ssub.s32 %s11, %s18
    %p20 = scmp.eq.s32.totalorder %s19, 0
    %s22 = sadd.s32 %s21, 1
    %s23 = scalar_select %p20, %s21, %s22
    %p26 = pneg %p20
    %p27 = scmp.eq.s32.totalorder %s11, 1
    %p28 = por %p26, %p27
    %p29 = scmp.ne.s32.totalorder %s21, %s24
    %p30 = scmp.eq.s32.totalorder %s11, 0
    %p31 = por %p29, %p30
    %p32 = scmp.ne.s32.totalorder %s21, %s24
    %p33 = scmp.eq.s32.totalorder %s16, 1
    %p34 = por %p32, %p33
    %p35 = scmp.ne.s32.totalorder %s24, %s25
    %p36 = scmp.eq.s32.totalorder %s16, 0
    %p37 = por %p35, %p36
    %p38 = scmp.ne.s32.totalorder %s24, %s25
    %p39 = scmp.eq.s32.totalorder %s17, 1
    %p40 = por %p38, %p39
    %p42 = scmp.ne.s32.totalorder %s25, %s41
    %p43 = scmp.eq.s32.totalorder %s17, 0
    %p44 = por %p42, %p43
    %s46 = sadd.s32 %s45, 1
    %p49 = scmp.eq.s32.totalorder %s11, 1
    %p50 = scmp.ne.s32.totalorder %s45, %s47
    %p51 = scmp.eq.s32.totalorder %s11, 0
    %p52 = por %p50, %p51
    %p53 = scmp.ne.s32.totalorder %s45, %s47
    %p54 = scmp.eq.s32.totalorder %s16, 1
    %p55 = por %p53, %p54
    %p56 = scmp.ne.s32.totalorder %s47, %s48
    %p57 = scmp.eq.s32.totalorder %s16, 0
    %p58 = por %p56, %p57
    %p59 = scmp.ne.s32.totalorder %s47, %s48
    %p60 = scmp.eq.s32.totalorder %s17, 1
    %p61 = por %p59, %p60
    %p63 = scmp.ne.s32.totalorder %s48, %s62
    %p64 = scmp.eq.s32.totalorder %s17, 0
    %p65 = por %p63, %p64
    %s67 = sadd.s32 %s66, 1
    %p70 = scmp.eq.s32.totalorder %s11, 1
    %p71 = scmp.ne.s32.totalorder %s66, %s68
    %p72 = scmp.eq.s32.totalorder %s11, 0
    %p73 = por %p71, %p72
    %p74 = scmp.ne.s32.totalorder %s66, %s68
    %p75 = scmp.eq.s32.totalorder %s16, 1
    %p76 = por %p74, %p75
    %p77 = scmp.ne.s32.totalorder %s68, %s69
    %p78 = scmp.eq.s32.totalorder %s16, 0
    %p79 = por %p77, %p78
    %p80 = scmp.ne.s32.totalorder %s68, %s69
    %p81 = scmp.eq.s32.totalorder %s17, 1
    %p82 = por %p80, %p81
    %p84 = scmp.ne.s32.totalorder %s69, %s83
    %p85 = scmp.eq.s32.totalorder %s17, 0
    %p86 = por %p84, %p85
    %s88 = sadd.s32 %s87, 1
    %p91 = scmp.eq.s32.totalorder %s11, 1
    %p92 = scmp.ne.s32.totalorder %s87, %s89
    %p93 = scmp.eq.s32.totalorder %s11, 0
    %p94 = por %p92, %p93
    %p95 = scmp.ne.s32.totalorder %s87, %s89
    %p96 = scmp.eq.s32.totalorder %s16, 1
    %p97 = por %p95, %p96
    %p98 = scmp.ne.s32.totalorder %s89, %s90
    %p99 = scmp.eq.s32.totalorder %s16, 0
    %p100 = por %p98, %p99
    %p101 = scmp.ne.s32.totalorder %s89, %s90
    %p102 = scmp.eq.s32.totalorder %s17, 1
    %p103 = por %p101, %p102
    %p105 = scmp.ne.s32.totalorder %s90, %s104
    %p106 = scmp.eq.s32.totalorder %s17, 0
    %p107 = por %p105, %p106
    %s109 = sadd.s32 %s108, 1
    %p112 = scmp.eq.s32.totalorder %s11, 1
    %p113 = scmp.ne.s32.totalorder %s108, %s110
    %p114 = scmp.eq.s32.totalorder %s11, 0
    %p115 = por %p113, %p114
    %p116 = scmp.ne.s32.totalorder %s108, %s110
    %p117 = scmp.eq.s32.totalorder %s16, 1
    %p118 = por %p116, %p117
    %p119 = scmp.ne.s32.totalorder %s110, %s111
    %p120 = scmp.eq.s32.totalorder %s16, 0
    %p121 = por %p119, %p120
    %p122 = scmp.ne.s32.totalorder %s110, %s111
    %p123 = scmp.eq.s32.totalorder %s17, 1
    %p124 = por %p122, %p123
    %p126 = scmp.ne.s32.totalorder %s111, %s125
    %p127 = scmp.eq.s32.totalorder %s17, 0
    %p128 = por %p126, %p127
    %s129 = ssub.s32 %s11, %s18
    %p130 = scmp.eq.s32.totalorder %s129, 0
    %s132 = sadd.s32 %s131, 1
    %s133 = scalar_select %p130, %s131, %s132
    %p136 = pneg %p130
    %p137 = scmp.eq.s32.totalorder %s11, 1
    %p138 = por %p136, %p137
    %p139 = scmp.ne.s32.totalorder %s131, %s134
    %p140 = scmp.eq.s32.totalorder %s11, 0
    %p141 = por %p139, %p140
    %p142 = scmp.ne.s32.totalorder %s131, %s134
    %p143 = scmp.eq.s32.totalorder %s16, 1
    %p144 = por %p142, %p143
    %p145 = scmp.ne.s32.totalorder %s134, %s135
    %p146 = scmp.eq.s32.totalorder %s16, 0
    %p147 = por %p145, %p146
    %p148 = scmp.ne.s32.totalorder %s134, %s135
    %p149 = scmp.eq.s32.totalorder %s17, 1
    %p150 = por %p148, %p149
    %p152 = scmp.ne.s32.totalorder %s135, %s151
    %p153 = scmp.eq.s32.totalorder %s17, 0
    %p154 = por %p152, %p153
    %p155 = scmp.le.s32.totalorder 1, %s11
    %p156 = scmp.lt.s32.totalorder %s11, 3
    %p157 = pnand %p155, %p156
    %p158 = pneg %p157
    // Predicated region
    $region9: #{dqn_forward.1} parent=5 // pred_check
      _
    $region10: #{dqn_forward.1} parent=5 // pred_check_branch
      %160 = sbr.rel (%p157) target = $region12
    $region11: #{dqn_forward.1} parent=5 // pred_region
      %s161 = ssub.s32 %s11, 1
      // Predicated region
      $region13: #{dqn_forward.1} parent=11 // pred_check
        %p162 = pneg %p58
      $region14: #{dqn_forward.1} parent=11 // pred_check_branch
        %164 = sbr.rel (%p162) target = $region16
      $region15: #{dqn_forward.1} parent=11 // pred_region
        _
      $region16: #{dqn_forward.1} parent=11 // pred_fallthru
        _
      // Predicated region
      $region17: #{dqn_forward.1} parent=11 // pred_check
        %p165 = pneg %p79
      $region18: #{dqn_forward.1} parent=11 // pred_check_branch
        %167 = sbr.rel (%p165) target = $region20
      $region19: #{dqn_forward.1} parent=11 // pred_region
        _
      $region20: #{dqn_forward.1} parent=11 // pred_fallthru
        _
      // Predicated region
      $region21: #{dqn_forward.1} parent=11 // pred_check
        %p168 = pneg %p100
      $region22: #{dqn_forward.1} parent=11 // pred_check_branch
        %170 = sbr.rel (%p168) target = $region24
      $region23: #{dqn_forward.1} parent=11 // pred_region
        _
      $region24: #{dqn_forward.1} parent=11 // pred_fallthru
        _
      // Predicated region
      $region25: #{dqn_forward.1} parent=11 // pred_check
        %p171 = pneg %p121
      $region26: #{dqn_forward.1} parent=11 // pred_check_branch
        %173 = sbr.rel (%p171) target = $region28
      $region27: #{dqn_forward.1} parent=11 // pred_region
        _
      $region28: #{dqn_forward.1} parent=11 // pred_fallthru
        _
    $region12: #{dqn_forward.1} parent=5 // pred_fallthru
      _
    %p174 = scmp.lt.s32.totalorder %s11, 2
    // Predicated region
    $region29: #{dqn_forward.1} parent=5 // pred_check
      %p175 = pneg %p174
    $region30: #{dqn_forward.1} parent=5 // pred_check_branch
      %177 = sbr.rel (%p175) target = $region32
    $region31: #{dqn_forward.1} parent=5 // pred_region
      // Predicated region
      $region33: #{dqn_forward.1} parent=31 // pred_check
        %p178 = pneg %p31
      $region34: #{dqn_forward.1} parent=31 // pred_check_branch
        %180 = sbr.rel (%p178) target = $region36
      $region35: #{dqn_forward.1} parent=31 // pred_region
        %s181 = smul.u32 16, %s11
        %p182 = scmp.lt.s32.totalorder %s181, 31
        %s183 = scalar_select %p182, %s181, 31
        %s184 = smul.addr %s183, 8
        %s185 = scalar_lea.vmem %s0, %s184
        %s186 = smul.u32 16, %s11
      $region36: #{dqn_forward.1} parent=31 // pred_fallthru
        _
    $region32: #{dqn_forward.1} parent=5 // pred_fallthru
      _
    %p187 = scmp.le.s32.totalorder 1, %s11
    %p188 = scmp.lt.s32.totalorder %s11, 3
    %p189 = pnand %p187, %p188
    %p190 = pneg %p189
    // Predicated region
    $region37: #{dqn_forward.1} parent=5 // pred_check
      _
    $region38: #{dqn_forward.1} parent=5 // pred_check_branch
      %192 = sbr.rel (%p189) target = $region40
    $region39: #{dqn_forward.1} parent=5 // pred_region
      %s193 = ssub.s32 %s11, 1
      %s194 = smul.u32 16, %s16
      %p195 = scmp.lt.s32.totalorder %s194, 31
      %s196 = scalar_select %p195, %s194, 31
      %s197 = smul.addr %s196, 8
      %s198 = scalar_lea.vmem %s0, %s197
      %p199 = pneg %p37
      %p200 = pneg %p34
      %p201 = pneg %p58
      %p202 = pneg %p55
      %p203 = pneg %p79
      %p204 = pneg %p76
      %p205 = pneg %p100
      %p206 = pneg %p97
      %p207 = pneg %p121
      %p208 = pneg %p118
      %p209 = pneg %p147
      %p210 = pneg %p144
      %s211 = smul.u32 16, %s16
      %p212 = scmp.lt.s32.totalorder %s211, 31
      %s213 = scalar_select %p212, %s211, 31
      %s214 = smul.addr %s213, 8
      %s215 = scalar_lea.vmem %s5, %s214
      %s216 = smul.u32 16, %s16
      %p217 = scmp.lt.s32.totalorder %s216, 31
      %s218 = scalar_select %p217, %s216, 31
      %s219 = smul.addr %s218, 8
      %s220 = scalar_lea.vmem %s0, %s219
      %s221 = smul.u32 16, %s16
      %s222 = smul.u32 16, %s16
      %p223 = scmp.lt.s32.totalorder %s222, 31
      %s224 = scalar_select %p223, %s222, 31
      %s225 = smul.addr %s224, 8
      %s226 = scalar_lea.vmem %s5, %s225
      %s227 = smul.u32 16, %s16
      %v229 = vld [vmem:[%s220] sm:$0xff]
      %v230 = vld [vmem:[%s220 + $0x8] sm:$0xff]
      %v231 = vld [vmem:[%s220 + $0x10] sm:$0xff]
      %v232 = vld [vmem:[%s220 + $0x18] sm:$0xff]
      %v233 = vld [vmem:[%s220 + $0x20] sm:$0xff]
      %v234 = vld [vmem:[%s220 + $0x28] sm:$0xff]
      %v235 = vld [vmem:[%s220 + $0x30] sm:$0xff]
      %v236 = vld [vmem:[%s220 + $0x38] sm:$0xff]
      %v237 = vld [vmem:[%s220 + $0x40] sm:$0xff]
      %v238 = vld [vmem:[%s220 + $0x48] sm:$0xff]
      %v239 = vld [vmem:[%s220 + $0x50] sm:$0xff]
      %v240 = vld [vmem:[%s220 + $0x58] sm:$0xff]
      %v241 = vld [vmem:[%s220 + $0x60] sm:$0xff]
      %v242 = vld [vmem:[%s220 + $0x68] sm:$0xff]
      %v243 = vld [vmem:[%s220 + $0x70] sm:$0xff]
      %v244 = vld [vmem:[%s220 + $0x78] sm:$0xff]
      %v245 = vpack.c.bf16 %v230, %v229
      %v246 = vpack.c.bf16 %v232, %v231
      %v247 = vpack.c.bf16 %v234, %v233
      %v248 = vpack.c.bf16 %v236, %v235
      %v249 = vpack.c.bf16 %v238, %v237
      %v250 = vpack.c.bf16 %v240, %v239
      %v251 = vpack.c.bf16 %v242, %v241
      %v252 = vpack.c.bf16 %v244, %v243
      %v253 = vld [vmem:[%s1] sm:$0xff]
      %v254 = vld [vmem:[%s1 + $0x8] sm:$0xff]
      %v255 = vld [vmem:[%s1 + $0x10] sm:$0xff]
      %v256 = vld [vmem:[%s1 + $0x18] sm:$0xff]
      %v257 = vld [vmem:[%s1 + $0x20] sm:$0xff]
      %v258 = vld [vmem:[%s1 + $0x28] sm:$0xff]
      %v259 = vld [vmem:[%s1 + $0x30] sm:$0xff]
      %v260 = vld [vmem:[%s1 + $0x38] sm:$0xff]
      %v269 = vunpack.c.l.b16 %v253
      %v270 = vunpack.c.h.b16 %v253
      %v271 = vunpack.c.l.b16 %v254
      %v272 = vunpack.c.h.b16 %v254
      %v273 = vunpack.c.l.b16 %v255
      %v274 = vunpack.c.h.b16 %v255
      %v275 = vunpack.c.l.b16 %v256
      %v276 = vunpack.c.h.b16 %v256
      %v277 = vunpack.c.l.b16 %v257
      %v278 = vunpack.c.h.b16 %v257
      %v279 = vunpack.c.l.b16 %v258
      %v280 = vunpack.c.h.b16 %v258
      %v281 = vunpack.c.l.b16 %v259
      %v282 = vunpack.c.h.b16 %v259
      %v283 = vunpack.c.l.b16 %v260
      %v284 = vunpack.c.h.b16 %v260
      %v285 = vpack.c.b16 %v273, %v269
      %v286 = vpack.c.b16 %v274, %v270
      %v287 = vpack.c.b16 %v275, %v271
      %v288 = vpack.c.b16 %v276, %v272
      %v289 = vpack.c.b16 %v281, %v277
      %v290 = vpack.c.b16 %v282, %v278
      %v291 = vpack.c.b16 %v283, %v279
      %v292 = vpack.c.b16 %v284, %v280
      %vm301 = vcmask 261120
      %v303 = vsel %vm301, %v245, 0
      %v306 = vsel %vm301, %v246, 0
      %v309 = vsel %vm301, %v247, 0
      %v312 = vsel %vm301, %v248, 0
      %v315 = vsel %vm301, %v249, 0
      %v318 = vsel %vm301, %v250, 0
      %v321 = vsel %vm301, %v251, 0
      %v324 = vsel %vm301, %v252, 0
      %326 = vmatpush.bf16.msra.mxu0 0
      %327 = vmatpush.bf16.msra.mxu0 0
      %328 = vmatpush.bf16.msra.mxu0 0
      %329 = vmatpush.bf16.msra.mxu0 0
      %330 = vmatpush.bf16.msra.mxu0 0
      %331 = vmatpush.bf16.msra.mxu0 0
      %332 = vmatpush.bf16.msra.mxu0 %v289
      %333 = vmatpush.bf16.msra.mxu0 %v285
      %334 = vmatmul.bf16.gmra.mxu0 %v303
      %v335 = vpop.f32.mrf.mxu0
      %v336 = vadd.f32 0.0, %v335
      %v337 = vpop.f32.mrf.mxu0
      %v338 = vadd.f32 0.0, %v337
      %339 = vmatmul.bf16.gmra.mxu0 %v306
      %v340 = vpop.f32.mrf.mxu0
      %v341 = vadd.f32 0.0, %v340
      %v342 = vpop.f32.mrf.mxu0
      %v343 = vadd.f32 0.0, %v342
      %344 = vmatmul.bf16.gmra.mxu0 %v309
      %v345 = vpop.f32.mrf.mxu0
      %v346 = vadd.f32 0.0, %v345
      %v347 = vpop.f32.mrf.mxu0
      %v348 = vadd.f32 0.0, %v347
      %349 = vmatmul.bf16.gmra.mxu0 %v312
      %v350 = vpop.f32.mrf.mxu0
      %v351 = vadd.f32 0.0, %v350
      %v352 = vpop.f32.mrf.mxu0
      %v353 = vadd.f32 0.0, %v352
      %354 = vmatmul.bf16.gmra.mxu0 %v315
      %v355 = vpop.f32.mrf.mxu0
      %v356 = vadd.f32 0.0, %v355
      %v357 = vpop.f32.mrf.mxu0
      %v358 = vadd.f32 0.0, %v357
      %359 = vmatmul.bf16.gmra.mxu0 %v318
      %v360 = vpop.f32.mrf.mxu0
      %v361 = vadd.f32 0.0, %v360
      %v362 = vpop.f32.mrf.mxu0
      %v363 = vadd.f32 0.0, %v362
      %364 = vmatmul.bf16.gmra.mxu0 %v321
      %v365 = vpop.f32.mrf.mxu0
      %v366 = vadd.f32 0.0, %v365
      %v367 = vpop.f32.mrf.mxu0
      %v368 = vadd.f32 0.0, %v367
      %369 = vmatmul.bf16.gmra.mxu0 %v324
      %v370 = vpop.f32.mrf.mxu0
      %v371 = vadd.f32 0.0, %v370
      %v372 = vpop.f32.mrf.mxu0
      %v373 = vadd.f32 0.0, %v372
      %374 = vdwg.mxu0
      %375 = vmatpush.bf16.msra.mxu0 0
      %376 = vmatpush.bf16.msra.mxu0 0
      %377 = vmatpush.bf16.msra.mxu0 0
      %378 = vmatpush.bf16.msra.mxu0 0
      %379 = vmatpush.bf16.msra.mxu0 0
      %380 = vmatpush.bf16.msra.mxu0 0
      %381 = vmatpush.bf16.msra.mxu0 %v290
      %382 = vmatpush.bf16.msra.mxu0 %v286
      %383 = vmatmul.bf16.gmra.mxu0 %v303
      %v384 = vpop.f32.mrf.mxu0
      %v385 = vadd.f32 0.0, %v384
      %v386 = vpop.f32.mrf.mxu0
      %v387 = vadd.f32 0.0, %v386
      %388 = vmatmul.bf16.gmra.mxu0 %v306
      %v389 = vpop.f32.mrf.mxu0
      %v390 = vadd.f32 0.0, %v389
      %v391 = vpop.f32.mrf.mxu0
      %v392 = vadd.f32 0.0, %v391
      %393 = vmatmul.bf16.gmra.mxu0 %v309
      %v394 = vpop.f32.mrf.mxu0
      %v395 = vadd.f32 0.0, %v394
      %v396 = vpop.f32.mrf.mxu0
      %v397 = vadd.f32 0.0, %v396
      %398 = vmatmul.bf16.gmra.mxu0 %v312
      %v399 = vpop.f32.mrf.mxu0
      %v400 = vadd.f32 0.0, %v399
      %v401 = vpop.f32.mrf.mxu0
      %v402 = vadd.f32 0.0, %v401
      %403 = vmatmul.bf16.gmra.mxu0 %v315
      %v404 = vpop.f32.mrf.mxu0
      %v405 = vadd.f32 0.0, %v404
      %v406 = vpop.f32.mrf.mxu0
      %v407 = vadd.f32 0.0, %v406
      %408 = vmatmul.bf16.gmra.mxu0 %v318
      %v409 = vpop.f32.mrf.mxu0
      %v410 = vadd.f32 0.0, %v409
      %v411 = vpop.f32.mrf.mxu0
      %v412 = vadd.f32 0.0, %v411
      %413 = vmatmul.bf16.gmra.mxu0 %v321
      %v414 = vpop.f32.mrf.mxu0
      %v415 = vadd.f32 0.0, %v414
      %v416 = vpop.f32.mrf.mxu0
      %v417 = vadd.f32 0.0, %v416
      %418 = vmatmul.bf16.gmra.mxu0 %v324
      %v419 = vpop.f32.mrf.mxu0
      %v420 = vadd.f32 0.0, %v419
      %v421 = vpop.f32.mrf.mxu0
      %v422 = vadd.f32 0.0, %v421
      %423 = vdwg.mxu0
      %424 = vmatpush.bf16.msra.mxu0 0
      %425 = vmatpush.bf16.msra.mxu0 0
      %426 = vmatpush.bf16.msra.mxu0 0
      %427 = vmatpush.bf16.msra.mxu0 0
      %428 = vmatpush.bf16.msra.mxu0 0
      %429 = vmatpush.bf16.msra.mxu0 0
      %430 = vmatpush.bf16.msra.mxu0 %v291
      %431 = vmatpush.bf16.msra.mxu0 %v287
      %432 = vmatmul.bf16.gmra.mxu0 %v303
      %v433 = vpop.f32.mrf.mxu0
      %v434 = vadd.f32 0.0, %v433
      %v435 = vpop.f32.mrf.mxu0
      %v436 = vadd.f32 0.0, %v435
      %437 = vmatmul.bf16.gmra.mxu0 %v306
      %v438 = vpop.f32.mrf.mxu0
      %v439 = vadd.f32 0.0, %v438
      %v440 = vpop.f32.mrf.mxu0
      %v441 = vadd.f32 0.0, %v440
      %442 = vmatmul.bf16.gmra.mxu0 %v309
      %v443 = vpop.f32.mrf.mxu0
      %v444 = vadd.f32 0.0, %v443
      %v445 = vpop.f32.mrf.mxu0
      %v446 = vadd.f32 0.0, %v445
      %447 = vmatmul.bf16.gmra.mxu0 %v312
      %v448 = vpop.f32.mrf.mxu0
      %v449 = vadd.f32 0.0, %v448
      %v450 = vpop.f32.mrf.mxu0
      %v451 = vadd.f32 0.0, %v450
      %452 = vmatmul.bf16.gmra.mxu0 %v315
      %v453 = vpop.f32.mrf.mxu0
      %v454 = vadd.f32 0.0, %v453
      %v455 = vpop.f32.mrf.mxu0
      %v456 = vadd.f32 0.0, %v455
      %457 = vmatmul.bf16.gmra.mxu0 %v318
      %v458 = vpop.f32.mrf.mxu0
      %v459 = vadd.f32 0.0, %v458
      %v460 = vpop.f32.mrf.mxu0
      %v461 = vadd.f32 0.0, %v460
      %462 = vmatmul.bf16.gmra.mxu0 %v321
      %v463 = vpop.f32.mrf.mxu0
      %v464 = vadd.f32 0.0, %v463
      %v465 = vpop.f32.mrf.mxu0
      %v466 = vadd.f32 0.0, %v465
      %467 = vmatmul.bf16.gmra.mxu0 %v324
      %v468 = vpop.f32.mrf.mxu0
      %v469 = vadd.f32 0.0, %v468
      %v470 = vpop.f32.mrf.mxu0
      %v471 = vadd.f32 0.0, %v470
      %472 = vdwg.mxu0
      %473 = vmatpush.bf16.msra.mxu0 0
      %474 = vmatpush.bf16.msra.mxu0 0
      %475 = vmatpush.bf16.msra.mxu0 0
      %476 = vmatpush.bf16.msra.mxu0 0
      %477 = vmatpush.bf16.msra.mxu0 0
      %478 = vmatpush.bf16.msra.mxu0 0
      %479 = vmatpush.bf16.msra.mxu0 %v292
      %480 = vmatpush.bf16.msra.mxu0 %v288
      %481 = vmatmul.bf16.gmra.mxu0 %v303
      %v482 = vpop.f32.mrf.mxu0
      %v483 = vadd.f32 0.0, %v482
      %v484 = vpop.f32.mrf.mxu0
      %v485 = vadd.f32 0.0, %v484
      %486 = vmatmul.bf16.gmra.mxu0 %v306
      %v487 = vpop.f32.mrf.mxu0
      %v488 = vadd.f32 0.0, %v487
      %v489 = vpop.f32.mrf.mxu0
      %v490 = vadd.f32 0.0, %v489
      %491 = vmatmul.bf16.gmra.mxu0 %v309
      %v492 = vpop.f32.mrf.mxu0
      %v493 = vadd.f32 0.0, %v492
      %v494 = vpop.f32.mrf.mxu0
      %v495 = vadd.f32 0.0, %v494
      %496 = vmatmul.bf16.gmra.mxu0 %v312
      %v497 = vpop.f32.mrf.mxu0
      %v498 = vadd.f32 0.0, %v497
      %v499 = vpop.f32.mrf.mxu0
      %v500 = vadd.f32 0.0, %v499
      %501 = vmatmul.bf16.gmra.mxu0 %v315
      %v502 = vpop.f32.mrf.mxu0
      %v503 = vadd.f32 0.0, %v502
      %v504 = vpop.f32.mrf.mxu0
      %v505 = vadd.f32 0.0, %v504
      %506 = vmatmul.bf16.gmra.mxu0 %v318
      %v507 = vpop.f32.mrf.mxu0
      %v508 = vadd.f32 0.0, %v507
      %v509 = vpop.f32.mrf.mxu0
      %v510 = vadd.f32 0.0, %v509
      %511 = vmatmul.bf16.gmra.mxu0 %v321
      %v512 = vpop.f32.mrf.mxu0
      %v513 = vadd.f32 0.0, %v512
      %v514 = vpop.f32.mrf.mxu0
      %v515 = vadd.f32 0.0, %v514
      %516 = vmatmul.bf16.gmra.mxu0 %v324
      %v517 = vpop.f32.mrf.mxu0
      %v518 = vadd.f32 0.0, %v517
      %v519 = vpop.f32.mrf.mxu0
      %v520 = vadd.f32 0.0, %v519
      %521 = vdwg.mxu0
      %v522 = vpack.c.bf16 %v385, %v336
      %v523 = vpack.c.bf16 %v483, %v434
      %v524 = vpack.c.bf16 %v387, %v338
      %v525 = vpack.c.bf16 %v485, %v436
      %v526 = vpack.c.bf16 %v390, %v341
      %v527 = vpack.c.bf16 %v488, %v439
      %v528 = vpack.c.bf16 %v392, %v343
      %v529 = vpack.c.bf16 %v490, %v441
      %v530 = vpack.c.bf16 %v395, %v346
      %v531 = vpack.c.bf16 %v493, %v444
      %v532 = vpack.c.bf16 %v397, %v348
      %v533 = vpack.c.bf16 %v495, %v446
      %v534 = vpack.c.bf16 %v400, %v351
      %v535 = vpack.c.bf16 %v498, %v449
      %v536 = vpack.c.bf16 %v402, %v353
      %v537 = vpack.c.bf16 %v500, %v451
      %v538 = vpack.c.bf16 %v405, %v356
      %v539 = vpack.c.bf16 %v503, %v454
      %v540 = vpack.c.bf16 %v407, %v358
      %v541 = vpack.c.bf16 %v505, %v456
      %v542 = vpack.c.bf16 %v410, %v361
      %v543 = vpack.c.bf16 %v508, %v459
      %v544 = vpack.c.bf16 %v412, %v363
      %v545 = vpack.c.bf16 %v510, %v461
      %v546 = vpack.c.bf16 %v415, %v366
      %v547 = vpack.c.bf16 %v513, %v464
      %v548 = vpack.c.bf16 %v417, %v368
      %v549 = vpack.c.bf16 %v515, %v466
      %v550 = vpack.c.bf16 %v420, %v371
      %v551 = vpack.c.bf16 %v518, %v469
      %v552 = vpack.c.bf16 %v422, %v373
      %v553 = vpack.c.bf16 %v520, %v471
      %v554 = vld [vmem:[%s2] sm:$0xf]
      %556 = vst [vmem:[#allocation1] ss:$9 sm:$0xff] %v554
      %v557 = vld [vmem:[#allocation1] sm:$0xff]
      %v558 = vld [vmem:[#allocation1 + $0x9] sm:$0xff]
      %v559 = vld [vmem:[#allocation1 + $0x12] sm:$0xff]
      %v560 = vld [vmem:[#allocation1 + $0x1b] sm:$0xff]
      %v561 = vpack.i.b16 %v557, %v557
      %v563 = vperm.slane %v561, 0
      %v564 = vpack.i.b16 %v558, %v558
      %v566 = vperm.slane %v564, 0
      %v567 = vpack.i.b16 %v559, %v559
      %v569 = vperm.slane %v567, 0
      %v570 = vpack.i.b16 %v560, %v560
      %v572 = vperm.slane %v570, 0
      %v573 = vunpack.c.l.bf16 %v522
      %v574 = vunpack.c.h.bf16 %v522
      %v575 = vunpack.c.l.bf16 %v523
      %v576 = vunpack.c.h.bf16 %v523
      %v577 = vunpack.c.l.bf16 %v524
      %v578 = vunpack.c.h.bf16 %v524
      %v579 = vunpack.c.l.bf16 %v525
      %v580 = vunpack.c.h.bf16 %v525
      %v581 = vunpack.c.l.bf16 %v526
      %v582 = vunpack.c.h.bf16 %v526
      %v583 = vunpack.c.l.bf16 %v527
      %v584 = vunpack.c.h.bf16 %v527
      %v585 = vunpack.c.l.bf16 %v528
      %v586 = vunpack.c.h.bf16 %v528
      %v587 = vunpack.c.l.bf16 %v529
      %v588 = vunpack.c.h.bf16 %v529
      %v589 = vunpack.c.l.bf16 %v530
      %v590 = vunpack.c.h.bf16 %v530
      %v591 = vunpack.c.l.bf16 %v531
      %v592 = vunpack.c.h.bf16 %v531
      %v593 = vunpack.c.l.bf16 %v532
      %v594 = vunpack.c.h.bf16 %v532
      %v595 = vunpack.c.l.bf16 %v533
      %v596 = vunpack.c.h.bf16 %v533
      %v597 = vunpack.c.l.bf16 %v534
      %v598 = vunpack.c.h.bf16 %v534
      %v599 = vunpack.c.l.bf16 %v535
      %v600 = vunpack.c.h.bf16 %v535
      %v601 = vunpack.c.l.bf16 %v536
      %v602 = vunpack.c.h.bf16 %v536
      %v603 = vunpack.c.l.bf16 %v537
      %v604 = vunpack.c.h.bf16 %v537
      %v605 = vunpack.c.l.bf16 %v538
      %v606 = vunpack.c.h.bf16 %v538
      %v607 = vunpack.c.l.bf16 %v539
      %v608 = vunpack.c.h.bf16 %v539
      %v609 = vunpack.c.l.bf16 %v540
      %v610 = vunpack.c.h.bf16 %v540
      %v611 = vunpack.c.l.bf16 %v541
      %v612 = vunpack.c.h.bf16 %v541
      %v613 = vunpack.c.l.bf16 %v542
      %v614 = vunpack.c.h.bf16 %v542
      %v615 = vunpack.c.l.bf16 %v543
      %v616 = vunpack.c.h.bf16 %v543
      %v617 = vunpack.c.l.bf16 %v544
      %v618 = vunpack.c.h.bf16 %v544
      %v619 = vunpack.c.l.bf16 %v545
      %v620 = vunpack.c.h.bf16 %v545
      %v621 = vunpack.c.l.bf16 %v546
      %v622 = vunpack.c.h.bf16 %v546
      %v623 = vunpack.c.l.bf16 %v547
      %v624 = vunpack.c.h.bf16 %v547
      %v625 = vunpack.c.l.bf16 %v548
      %v626 = vunpack.c.h.bf16 %v548
      %v627 = vunpack.c.l.bf16 %v549
      %v628 = vunpack.c.h.bf16 %v549
      %v629 = vunpack.c.l.bf16 %v550
      %v630 = vunpack.c.h.bf16 %v550
      %v631 = vunpack.c.l.bf16 %v551
      %v632 = vunpack.c.h.bf16 %v551
      %v633 = vunpack.c.l.bf16 %v552
      %v634 = vunpack.c.h.bf16 %v552
      %v635 = vunpack.c.l.bf16 %v553
      %v636 = vunpack.c.h.bf16 %v553
      %v637 = vunpack.c.l.bf16 %v563
      %v638 = vunpack.c.l.bf16 %v566
      %v639 = vunpack.c.l.bf16 %v569
      %v640 = vunpack.c.l.bf16 %v572
      %v641 = vadd.f32 %v573, %v637
      %v642 = vadd.f32 %v574, %v638
      %v643 = vadd.f32 %v575, %v639
      %v644 = vadd.f32 %v576, %v640
      %v645 = vadd.f32 %v577, %v637
      %v646 = vadd.f32 %v578, %v638
      %v647 = vadd.f32 %v579, %v639
      %v648 = vadd.f32 %v580, %v640
      %v649 = vadd.f32 %v581, %v637
      %v650 = vadd.f32 %v582, %v638
      %v651 = vadd.f32 %v583, %v639
      %v652 = vadd.f32 %v584, %v640
      %v653 = vadd.f32 %v585, %v637
      %v654 = vadd.f32 %v586, %v638
      %v655 = vadd.f32 %v587, %v639
      %v656 = vadd.f32 %v588, %v640
      %v657 = vadd.f32 %v589, %v637
      %v658 = vadd.f32 %v590, %v638
      %v659 = vadd.f32 %v591, %v639
      %v660 = vadd.f32 %v592, %v640
      %v661 = vadd.f32 %v593, %v637
      %v662 = vadd.f32 %v594, %v638
      %v663 = vadd.f32 %v595, %v639
      %v664 = vadd.f32 %v596, %v640
      %v665 = vadd.f32 %v597, %v637
      %v666 = vadd.f32 %v598, %v638
      %v667 = vadd.f32 %v599, %v639
      %v668 = vadd.f32 %v600, %v640
      %v669 = vadd.f32 %v601, %v637
      %v670 = vadd.f32 %v602, %v638
      %v671 = vadd.f32 %v603, %v639
      %v672 = vadd.f32 %v604, %v640
      %v673 = vadd.f32 %v605, %v637
      %v674 = vadd.f32 %v606, %v638
      %v675 = vadd.f32 %v607, %v639
      %v676 = vadd.f32 %v608, %v640
      %v677 = vadd.f32 %v609, %v637
      %v678 = vadd.f32 %v610, %v638
      %v679 = vadd.f32 %v611, %v639
      %v680 = vadd.f32 %v612, %v640
      %v681 = vadd.f32 %v613, %v637
      %v682 = vadd.f32 %v614, %v638
      %v683 = vadd.f32 %v615, %v639
      %v684 = vadd.f32 %v616, %v640
      %v685 = vadd.f32 %v617, %v637
      %v686 = vadd.f32 %v618, %v638
      %v687 = vadd.f32 %v619, %v639
      %v688 = vadd.f32 %v620, %v640
      %v689 = vadd.f32 %v621, %v637
      %v690 = vadd.f32 %v622, %v638
      %v691 = vadd.f32 %v623, %v639
      %v692 = vadd.f32 %v624, %v640
      %v693 = vadd.f32 %v625, %v637
      %v694 = vadd.f32 %v626, %v638
      %v695 = vadd.f32 %v627, %v639
      %v696 = vadd.f32 %v628, %v640
      %v697 = vadd.f32 %v629, %v637
      %v698 = vadd.f32 %v630, %v638
      %v699 = vadd.f32 %v631, %v639
      %v700 = vadd.f32 %v632, %v640
      %v701 = vadd.f32 %v633, %v637
      %v702 = vadd.f32 %v634, %v638
      %v703 = vadd.f32 %v635, %v639
      %v704 = vadd.f32 %v636, %v640
      %v705 = vpack.c.bf16 %v645, %v641
      %v706 = vpack.c.bf16 %v646, %v642
      %v707 = vpack.c.bf16 %v647, %v643
      %v708 = vpack.c.bf16 %v648, %v644
      %v709 = vpack.c.bf16 %v653, %v649
      %v710 = vpack.c.bf16 %v654, %v650
      %v711 = vpack.c.bf16 %v655, %v651
      %v712 = vpack.c.bf16 %v656, %v652
      %v713 = vpack.c.bf16 %v661, %v657
      %v714 = vpack.c.bf16 %v662, %v658
      %v715 = vpack.c.bf16 %v663, %v659
      %v716 = vpack.c.bf16 %v664, %v660
      %v717 = vpack.c.bf16 %v669, %v665
      %v718 = vpack.c.bf16 %v670, %v666
      %v719 = vpack.c.bf16 %v671, %v667
      %v720 = vpack.c.bf16 %v672, %v668
      %v721 = vpack.c.bf16 %v677, %v673
      %v722 = vpack.c.bf16 %v678, %v674
      %v723 = vpack.c.bf16 %v679, %v675
      %v724 = vpack.c.bf16 %v680, %v676
      %v725 = vpack.c.bf16 %v685, %v681
      %v726 = vpack.c.bf16 %v686, %v682
      %v727 = vpack.c.bf16 %v687, %v683
      %v728 = vpack.c.bf16 %v688, %v684
      %v729 = vpack.c.bf16 %v693, %v689
      %v730 = vpack.c.bf16 %v694, %v690
      %v731 = vpack.c.bf16 %v695, %v691
      %v732 = vpack.c.bf16 %v696, %v692
      %v733 = vpack.c.bf16 %v701, %v697
      %v734 = vpack.c.bf16 %v702, %v698
      %v735 = vpack.c.bf16 %v703, %v699
      %v736 = vpack.c.bf16 %v704, %v700
      %v737 = vunpack.c.l.bf16 %v705
      %v738 = vunpack.c.l.bf16 %v706
      %v739 = vunpack.c.l.bf16 %v707
      %v740 = vunpack.c.l.bf16 %v708
      %v741 = vunpack.c.h.bf16 %v705
      %v742 = vunpack.c.h.bf16 %v706
      %v743 = vunpack.c.h.bf16 %v707
      %v744 = vunpack.c.h.bf16 %v708
      %v745 = vunpack.c.l.bf16 %v709
      %v746 = vunpack.c.l.bf16 %v710
      %v747 = vunpack.c.l.bf16 %v711
      %v748 = vunpack.c.l.bf16 %v712
      %v749 = vunpack.c.h.bf16 %v709
      %v750 = vunpack.c.h.bf16 %v710
      %v751 = vunpack.c.h.bf16 %v711
      %v752 = vunpack.c.h.bf16 %v712
      %v753 = vunpack.c.l.bf16 %v713
      %v754 = vunpack.c.l.bf16 %v714
      %v755 = vunpack.c.l.bf16 %v715
      %v756 = vunpack.c.l.bf16 %v716
      %v757 = vunpack.c.h.bf16 %v713
      %v758 = vunpack.c.h.bf16 %v714
      %v759 = vunpack.c.h.bf16 %v715
      %v760 = vunpack.c.h.bf16 %v716
      %v761 = vunpack.c.l.bf16 %v717
      %v762 = vunpack.c.l.bf16 %v718
      %v763 = vunpack.c.l.bf16 %v719
      %v764 = vunpack.c.l.bf16 %v720
      %v765 = vunpack.c.h.bf16 %v717
      %v766 = vunpack.c.h.bf16 %v718
      %v767 = vunpack.c.h.bf16 %v719
      %v768 = vunpack.c.h.bf16 %v720
      %v769 = vunpack.c.l.bf16 %v721
      %v770 = vunpack.c.l.bf16 %v722
      %v771 = vunpack.c.l.bf16 %v723
      %v772 = vunpack.c.l.bf16 %v724
      %v773 = vunpack.c.h.bf16 %v721
      %v774 = vunpack.c.h.bf16 %v722
      %v775 = vunpack.c.h.bf16 %v723
      %v776 = vunpack.c.h.bf16 %v724
      %v777 = vunpack.c.l.bf16 %v725
      %v778 = vunpack.c.l.bf16 %v726
      %v779 = vunpack.c.l.bf16 %v727
      %v780 = vunpack.c.l.bf16 %v728
      %v781 = vunpack.c.h.bf16 %v725
      %v782 = vunpack.c.h.bf16 %v726
      %v783 = vunpack.c.h.bf16 %v727
      %v784 = vunpack.c.h.bf16 %v728
      %v785 = vunpack.c.l.bf16 %v729
      %v786 = vunpack.c.l.bf16 %v730
      %v787 = vunpack.c.l.bf16 %v731
      %v788 = vunpack.c.l.bf16 %v732
      %v789 = vunpack.c.h.bf16 %v729
      %v790 = vunpack.c.h.bf16 %v730
      %v791 = vunpack.c.h.bf16 %v731
      %v792 = vunpack.c.h.bf16 %v732
      %v793 = vunpack.c.l.bf16 %v733
      %v794 = vunpack.c.l.bf16 %v734
      %v795 = vunpack.c.l.bf16 %v735
      %v796 = vunpack.c.l.bf16 %v736
      %v797 = vunpack.c.h.bf16 %v733
      %v798 = vunpack.c.h.bf16 %v734
      %v799 = vunpack.c.h.bf16 %v735
      %v800 = vunpack.c.h.bf16 %v736
      %v801 = vtanh.pop %v737
      %v802 = vtanh.pop %v738
      %v803 = vtanh.pop %v739
      %v804 = vtanh.pop %v740
      %v805 = vtanh.pop %v741
      %v806 = vtanh.pop %v742
      %v807 = vtanh.pop %v743
      %v808 = vtanh.pop %v744
      %v809 = vtanh.pop %v745
      %v810 = vtanh.pop %v746
      %v811 = vtanh.pop %v747
      %v812 = vtanh.pop %v748
      %v813 = vtanh.pop %v749
      %v814 = vtanh.pop %v750
      %v815 = vtanh.pop %v751
      %v816 = vtanh.pop %v752
      %v817 = vtanh.pop %v753
      %v818 = vtanh.pop %v754
      %v819 = vtanh.pop %v755
      %v820 = vtanh.pop %v756
      %v821 = vtanh.pop %v757
      %v822 = vtanh.pop %v758
      %v823 = vtanh.pop %v759
      %v824 = vtanh.pop %v760
      %v825 = vtanh.pop %v761
      %v826 = vtanh.pop %v762
      %v827 = vtanh.pop %v763
      %v828 = vtanh.pop %v764
      %v829 = vtanh.pop %v765
      %v830 = vtanh.pop %v766
      %v831 = vtanh.pop %v767
      %v832 = vtanh.pop %v768
      %v833 = vtanh.pop %v769
      %v834 = vtanh.pop %v770
      %v835 = vtanh.pop %v771
      %v836 = vtanh.pop %v772
      %v837 = vtanh.pop %v773
      %v838 = vtanh.pop %v774
      %v839 = vtanh.pop %v775
      %v840 = vtanh.pop %v776
      %v841 = vtanh.pop %v777
      %v842 = vtanh.pop %v778
      %v843 = vtanh.pop %v779
      %v844 = vtanh.pop %v780
      %v845 = vtanh.pop %v781
      %v846 = vtanh.pop %v782
      %v847 = vtanh.pop %v783
      %v848 = vtanh.pop %v784
      %v849 = vtanh.pop %v785
      %v850 = vtanh.pop %v786
      %v851 = vtanh.pop %v787
      %v852 = vtanh.pop %v788
      %v853 = vtanh.pop %v789
      %v854 = vtanh.pop %v790
      %v855 = vtanh.pop %v791
      %v856 = vtanh.pop %v792
      %v857 = vtanh.pop %v793
      %v858 = vtanh.pop %v794
      %v859 = vtanh.pop %v795
      %v860 = vtanh.pop %v796
      %v861 = vtanh.pop %v797
      %v862 = vtanh.pop %v798
      %v863 = vtanh.pop %v799
      %v864 = vtanh.pop %v800
      %v865 = vpack.c.bf16 %v805, %v801
      %v866 = vpack.c.bf16 %v806, %v802
      %v867 = vpack.c.bf16 %v807, %v803
      %v868 = vpack.c.bf16 %v808, %v804
      %v869 = vpack.c.bf16 %v813, %v809
      %v870 = vpack.c.bf16 %v814, %v810
      %v871 = vpack.c.bf16 %v815, %v811
      %v872 = vpack.c.bf16 %v816, %v812
      %v873 = vpack.c.bf16 %v821, %v817
      %v874 = vpack.c.bf16 %v822, %v818
      %v875 = vpack.c.bf16 %v823, %v819
      %v876 = vpack.c.bf16 %v824, %v820
      %v877 = vpack.c.bf16 %v829, %v825
      %v878 = vpack.c.bf16 %v830, %v826
      %v879 = vpack.c.bf16 %v831, %v827
      %v880 = vpack.c.bf16 %v832, %v828
      %v881 = vpack.c.bf16 %v837, %v833
      %v882 = vpack.c.bf16 %v838, %v834
      %v883 = vpack.c.bf16 %v839, %v835
      %v884 = vpack.c.bf16 %v840, %v836
      %v885 = vpack.c.bf16 %v845, %v841
      %v886 = vpack.c.bf16 %v846, %v842
      %v887 = vpack.c.bf16 %v847, %v843
      %v888 = vpack.c.bf16 %v848, %v844
      %v889 = vpack.c.bf16 %v853, %v849
      %v890 = vpack.c.bf16 %v854, %v850
      %v891 = vpack.c.bf16 %v855, %v851
      %v892 = vpack.c.bf16 %v856, %v852
      %v893 = vpack.c.bf16 %v861, %v857
      %v894 = vpack.c.bf16 %v862, %v858
      %v895 = vpack.c.bf16 %v863, %v859
      %v896 = vpack.c.bf16 %v864, %v860
      %v897 = vld [vmem:[%s3] sm:$0xf]
      %v898 = vld [vmem:[%s3 + $0x4] sm:$0xf]
      %v899 = vld [vmem:[%s3 + $0x8] sm:$0xf]
      %v900 = vld [vmem:[%s3 + $0xc] sm:$0xf]
      %v901 = vld [vmem:[%s3 + $0x10] sm:$0xf]
      %v902 = vld [vmem:[%s3 + $0x14] sm:$0xf]
      %v903 = vld [vmem:[%s3 + $0x18] sm:$0xf]
      %v904 = vld [vmem:[%s3 + $0x1c] sm:$0xf]
      %v905 = vld [vmem:[%s3 + $0x20] sm:$0xf]
      %v906 = vld [vmem:[%s3 + $0x24] sm:$0xf]
      %v907 = vld [vmem:[%s3 + $0x28] sm:$0xf]
      %v908 = vld [vmem:[%s3 + $0x2c] sm:$0xf]
      %v909 = vld [vmem:[%s3 + $0x30] sm:$0xf]
      %v910 = vld [vmem:[%s3 + $0x34] sm:$0xf]
      %v911 = vld [vmem:[%s3 + $0x38] sm:$0xf]
      %v912 = vld [vmem:[%s3 + $0x3c] sm:$0xf]
      %v913 = vld [vmem:[%s3 + $0x40] sm:$0xf]
      %v914 = vld [vmem:[%s3 + $0x44] sm:$0xf]
      %v915 = vld [vmem:[%s3 + $0x48] sm:$0xf]
      %v916 = vld [vmem:[%s3 + $0x4c] sm:$0xf]
      %v917 = vld [vmem:[%s3 + $0x50] sm:$0xf]
      %v918 = vld [vmem:[%s3 + $0x54] sm:$0xf]
      %v919 = vld [vmem:[%s3 + $0x58] sm:$0xf]
      %v920 = vld [vmem:[%s3 + $0x5c] sm:$0xf]
      %v921 = vld [vmem:[%s3 + $0x60] sm:$0xf]
      %v922 = vld [vmem:[%s3 + $0x64] sm:$0xf]
      %v923 = vld [vmem:[%s3 + $0x68] sm:$0xf]
      %v924 = vld [vmem:[%s3 + $0x6c] sm:$0xf]
      %v925 = vld [vmem:[%s3 + $0x70] sm:$0xf]
      %v926 = vld [vmem:[%s3 + $0x74] sm:$0xf]
      %v927 = vld [vmem:[%s3 + $0x78] sm:$0xf]
      %v928 = vld [vmem:[%s3 + $0x7c] sm:$0xf]
      %v929 = vld [vmem:[%s3 + $0x80] sm:$0xf]
      %v930 = vld [vmem:[%s3 + $0x84] sm:$0xf]
      %v931 = vld [vmem:[%s3 + $0x88] sm:$0xf]
      %v932 = vld [vmem:[%s3 + $0x8c] sm:$0xf]
      %v933 = vld [vmem:[%s3 + $0x90] sm:$0xf]
      %v934 = vld [vmem:[%s3 + $0x94] sm:$0xf]
      %v935 = vld [vmem:[%s3 + $0x98] sm:$0xf]
      %v936 = vld [vmem:[%s3 + $0x9c] sm:$0xf]
      %v937 = vld [vmem:[%s3 + $0xa0] sm:$0xf]
      %v938 = vld [vmem:[%s3 + $0xa4] sm:$0xf]
      %v939 = vld [vmem:[%s3 + $0xa8] sm:$0xf]
      %v940 = vld [vmem:[%s3 + $0xac] sm:$0xf]
      %v941 = vld [vmem:[%s3 + $0xb0] sm:$0xf]
      %v942 = vld [vmem:[%s3 + $0xb4] sm:$0xf]
      %v943 = vld [vmem:[%s3 + $0xb8] sm:$0xf]
      %v944 = vld [vmem:[%s3 + $0xbc] sm:$0xf]
      %v945 = vld [vmem:[%s3 + $0xc0] sm:$0xf]
      %v946 = vld [vmem:[%s3 + $0xc4] sm:$0xf]
      %v947 = vld [vmem:[%s3 + $0xc8] sm:$0xf]
      %v948 = vld [vmem:[%s3 + $0xcc] sm:$0xf]
      %v949 = vld [vmem:[%s3 + $0xd0] sm:$0xf]
      %v950 = vld [vmem:[%s3 + $0xd4] sm:$0xf]
      %v951 = vld [vmem:[%s3 + $0xd8] sm:$0xf]
      %v952 = vld [vmem:[%s3 + $0xdc] sm:$0xf]
      %v953 = vld [vmem:[%s3 + $0xe0] sm:$0xf]
      %v954 = vld [vmem:[%s3 + $0xe4] sm:$0xf]
      %v955 = vld [vmem:[%s3 + $0xe8] sm:$0xf]
      %v956 = vld [vmem:[%s3 + $0xec] sm:$0xf]
      %v957 = vld [vmem:[%s3 + $0xf0] sm:$0xf]
      %v958 = vld [vmem:[%s3 + $0xf4] sm:$0xf]
      %v959 = vld [vmem:[%s3 + $0xf8] sm:$0xf]
      %v960 = vld [vmem:[%s3 + $0xfc] sm:$0xf]
      %v961 = vld [vmem:[%s4] sm:$0x1]
      %v963 = vperm.slane %v961, 0
      %v1029 = vunpack.c.l.b16 %v897
      %v1030 = vunpack.c.l.b16 %v898
      %v1031 = vunpack.c.l.b16 %v899
      %v1032 = vunpack.c.l.b16 %v900
      %v1033 = vunpack.c.l.b16 %v901
      %v1034 = vunpack.c.l.b16 %v902
      %v1035 = vunpack.c.l.b16 %v903
      %v1036 = vunpack.c.l.b16 %v904
      %v1037 = vunpack.c.l.b16 %v905
      %v1038 = vunpack.c.l.b16 %v906
      %v1039 = vunpack.c.l.b16 %v907
      %v1040 = vunpack.c.l.b16 %v908
      %v1041 = vunpack.c.l.b16 %v909
      %v1042 = vunpack.c.l.b16 %v910
      %v1043 = vunpack.c.l.b16 %v911
      %v1044 = vunpack.c.l.b16 %v912
      %v1045 = vunpack.c.l.b16 %v913
      %v1046 = vunpack.c.l.b16 %v914
      %v1047 = vunpack.c.l.b16 %v915
      %v1048 = vunpack.c.l.b16 %v916
      %v1049 = vunpack.c.l.b16 %v917
      %v1050 = vunpack.c.l.b16 %v918
      %v1051 = vunpack.c.l.b16 %v919
      %v1052 = vunpack.c.l.b16 %v920
      %v1053 = vunpack.c.l.b16 %v921
      %v1054 = vunpack.c.l.b16 %v922
      %v1055 = vunpack.c.l.b16 %v923
      %v1056 = vunpack.c.l.b16 %v924
      %v1057 = vunpack.c.l.b16 %v925
      %v1058 = vunpack.c.l.b16 %v926
      %v1059 = vunpack.c.l.b16 %v927
      %v1060 = vunpack.c.l.b16 %v928
      %v1061 = vunpack.c.l.b16 %v929
      %v1062 = vunpack.c.l.b16 %v930
      %v1063 = vunpack.c.l.b16 %v931
      %v1064 = vunpack.c.l.b16 %v932
      %v1065 = vunpack.c.l.b16 %v933
      %v1066 = vunpack.c.l.b16 %v934
      %v1067 = vunpack.c.l.b16 %v935
      %v1068 = vunpack.c.l.b16 %v936
      %v1069 = vunpack.c.l.b16 %v937
      %v1070 = vunpack.c.l.b16 %v938
      %v1071 = vunpack.c.l.b16 %v939
      %v1072 = vunpack.c.l.b16 %v940
      %v1073 = vunpack.c.l.b16 %v941
      %v1074 = vunpack.c.l.b16 %v942
      %v1075 = vunpack.c.l.b16 %v943
      %v1076 = vunpack.c.l.b16 %v944
      %v1077 = vunpack.c.l.b16 %v945
      %v1078 = vunpack.c.l.b16 %v946
      %v1079 = vunpack.c.l.b16 %v947
      %v1080 = vunpack.c.l.b16 %v948
      %v1081 = vunpack.c.l.b16 %v949
      %v1082 = vunpack.c.l.b16 %v950
      %v1083 = vunpack.c.l.b16 %v951
      %v1084 = vunpack.c.l.b16 %v952
      %v1085 = vunpack.c.l.b16 %v953
      %v1086 = vunpack.c.l.b16 %v954
      %v1087 = vunpack.c.l.b16 %v955
      %v1088 = vunpack.c.l.b16 %v956
      %v1089 = vunpack.c.l.b16 %v957
      %v1090 = vunpack.c.l.b16 %v958
      %v1091 = vunpack.c.l.b16 %v959
      %v1092 = vunpack.c.l.b16 %v960
      %v1093 = vpack.c.b16 %v1030, %v1029
      %v1094 = vpack.c.b16 %v1032, %v1031
      %v1095 = vpack.c.b16 %v1034, %v1033
      %v1096 = vpack.c.b16 %v1036, %v1035
      %v1097 = vpack.c.b16 %v1038, %v1037
      %v1098 = vpack.c.b16 %v1040, %v1039
      %v1099 = vpack.c.b16 %v1042, %v1041
      %v1100 = vpack.c.b16 %v1044, %v1043
      %v1101 = vpack.c.b16 %v1046, %v1045
      %v1102 = vpack.c.b16 %v1048, %v1047
      %v1103 = vpack.c.b16 %v1050, %v1049
      %v1104 = vpack.c.b16 %v1052, %v1051
      %v1105 = vpack.c.b16 %v1054, %v1053
      %v1106 = vpack.c.b16 %v1056, %v1055
      %v1107 = vpack.c.b16 %v1058, %v1057
      %v1108 = vpack.c.b16 %v1060, %v1059
      %v1109 = vpack.c.b16 %v1062, %v1061
      %v1110 = vpack.c.b16 %v1064, %v1063
      %v1111 = vpack.c.b16 %v1066, %v1065
      %v1112 = vpack.c.b16 %v1068, %v1067
      %v1113 = vpack.c.b16 %v1070, %v1069
      %v1114 = vpack.c.b16 %v1072, %v1071
      %v1115 = vpack.c.b16 %v1074, %v1073
      %v1116 = vpack.c.b16 %v1076, %v1075
      %v1117 = vpack.c.b16 %v1078, %v1077
      %v1118 = vpack.c.b16 %v1080, %v1079
      %v1119 = vpack.c.b16 %v1082, %v1081
      %v1120 = vpack.c.b16 %v1084, %v1083
      %v1121 = vpack.c.b16 %v1086, %v1085
      %v1122 = vpack.c.b16 %v1088, %v1087
      %v1123 = vpack.c.b16 %v1090, %v1089
      %v1124 = vpack.c.b16 %v1092, %v1091
      %1157 = vmatpush.bf16.msra.mxu0 %v1100
      %1158 = vmatpush.bf16.msra.mxu0 %v1099
      %1159 = vmatpush.bf16.msra.mxu0 %v1098
      %1160 = vmatpush.bf16.msra.mxu0 %v1097
      %1161 = vmatpush.bf16.msra.mxu0 %v1096
      %1162 = vmatpush.bf16.msra.mxu0 %v1095
      %1163 = vmatpush.bf16.msra.mxu0 %v1094
      %1164 = vmatpush.bf16.msra.mxu0 %v1093
      %1165 = vmatmul.bf16.gmra.mxu0 %v865
      %v1166 = vpop.f32.mrf.mxu0
      %v1167 = vadd.f32 %v963, %v1166
      %v1168 = vpop.f32.mrf.mxu0
      %v1169 = vadd.f32 %v963, %v1168
      %1170 = vmatmul.bf16.gmra.mxu0 %v869
      %v1171 = vpop.f32.mrf.mxu0
      %v1172 = vadd.f32 %v963, %v1171
      %v1173 = vpop.f32.mrf.mxu0
      %v1174 = vadd.f32 %v963, %v1173
      %1175 = vmatmul.bf16.gmra.mxu0 %v873
      %v1176 = vpop.f32.mrf.mxu0
      %v1177 = vadd.f32 %v963, %v1176
      %v1178 = vpop.f32.mrf.mxu0
      %v1179 = vadd.f32 %v963, %v1178
      %1180 = vmatmul.bf16.gmra.mxu0 %v877
      %v1181 = vpop.f32.mrf.mxu0
      %v1182 = vadd.f32 %v963, %v1181
      %v1183 = vpop.f32.mrf.mxu0
      %v1184 = vadd.f32 %v963, %v1183
      %1185 = vmatmul.bf16.gmra.mxu0 %v881
      %v1186 = vpop.f32.mrf.mxu0
      %v1187 = vadd.f32 %v963, %v1186
      %v1188 = vpop.f32.mrf.mxu0
      %v1189 = vadd.f32 %v963, %v1188
      %1190 = vmatmul.bf16.gmra.mxu0 %v885
      %v1191 = vpop.f32.mrf.mxu0
      %v1192 = vadd.f32 %v963, %v1191
      %v1193 = vpop.f32.mrf.mxu0
      %v1194 = vadd.f32 %v963, %v1193
      %1195 = vmatmul.bf16.gmra.mxu0 %v889
      %v1196 = vpop.f32.mrf.mxu0
      %v1197 = vadd.f32 %v963, %v1196
      %v1198 = vpop.f32.mrf.mxu0
      %v1199 = vadd.f32 %v963, %v1198
      %1200 = vmatmul.bf16.gmra.mxu0 %v893
      %v1201 = vpop.f32.mrf.mxu0
      %v1202 = vadd.f32 %v963, %v1201
      %v1203 = vpop.f32.mrf.mxu0
      %v1204 = vadd.f32 %v963, %v1203
      %1205 = vdwg.mxu0
      %1206 = vmatpush.bf16.msra.mxu0 %v1108
      %1207 = vmatpush.bf16.msra.mxu0 %v1107
      %1208 = vmatpush.bf16.msra.mxu0 %v1106
      %1209 = vmatpush.bf16.msra.mxu0 %v1105
      %1210 = vmatpush.bf16.msra.mxu0 %v1104
      %1211 = vmatpush.bf16.msra.mxu0 %v1103
      %1212 = vmatpush.bf16.msra.mxu0 %v1102
      %1213 = vmatpush.bf16.msra.mxu0 %v1101
      %1214 = vmatmul.bf16.gmra.mxu0 %v866
      %v1215 = vpop.f32.mrf.mxu0
      %v1216 = vadd.f32 %v1167, %v1215
      %v1217 = vpop.f32.mrf.mxu0
      %v1218 = vadd.f32 %v1169, %v1217
      %1219 = vmatmul.bf16.gmra.mxu0 %v870
      %v1220 = vpop.f32.mrf.mxu0
      %v1221 = vadd.f32 %v1172, %v1220
      %v1222 = vpop.f32.mrf.mxu0
      %v1223 = vadd.f32 %v1174, %v1222
      %1224 = vmatmul.bf16.gmra.mxu0 %v874
      %v1225 = vpop.f32.mrf.mxu0
      %v1226 = vadd.f32 %v1177, %v1225
      %v1227 = vpop.f32.mrf.mxu0
      %v1228 = vadd.f32 %v1179, %v1227
      %1229 = vmatmul.bf16.gmra.mxu0 %v878
      %v1230 = vpop.f32.mrf.mxu0
      %v1231 = vadd.f32 %v1182, %v1230
      %v1232 = vpop.f32.mrf.mxu0
      %v1233 = vadd.f32 %v1184, %v1232
      %1234 = vmatmul.bf16.gmra.mxu0 %v882
      %v1235 = vpop.f32.mrf.mxu0
      %v1236 = vadd.f32 %v1187, %v1235
      %v1237 = vpop.f32.mrf.mxu0
      %v1238 = vadd.f32 %v1189, %v1237
      %1239 = vmatmul.bf16.gmra.mxu0 %v886
      %v1240 = vpop.f32.mrf.mxu0
      %v1241 = vadd.f32 %v1192, %v1240
      %v1242 = vpop.f32.mrf.mxu0
      %v1243 = vadd.f32 %v1194, %v1242
      %1244 = vmatmul.bf16.gmra.mxu0 %v890
      %v1245 = vpop.f32.mrf.mxu0
      %v1246 = vadd.f32 %v1197, %v1245
      %v1247 = vpop.f32.mrf.mxu0
      %v1248 = vadd.f32 %v1199, %v1247
      %1249 = vmatmul.bf16.gmra.mxu0 %v894
      %v1250 = vpop.f32.mrf.mxu0
      %v1251 = vadd.f32 %v1202, %v1250
      %v1252 = vpop.f32.mrf.mxu0
      %v1253 = vadd.f32 %v1204, %v1252
      %1254 = vdwg.mxu0
      %1255 = vmatpush.bf16.msra.mxu0 %v1116
      %1256 = vmatpush.bf16.msra.mxu0 %v1115
      %1257 = vmatpush.bf16.msra.mxu0 %v1114
      %1258 = vmatpush.bf16.msra.mxu0 %v1113
      %1259 = vmatpush.bf16.msra.mxu0 %v1112
      %1260 = vmatpush.bf16.msra.mxu0 %v1111
      %1261 = vmatpush.bf16.msra.mxu0 %v1110
      %1262 = vmatpush.bf16.msra.mxu0 %v1109
      %1263 = vmatmul.bf16.gmra.mxu0 %v867
      %v1264 = vpop.f32.mrf.mxu0
      %v1265 = vadd.f32 %v1216, %v1264
      %v1266 = vpop.f32.mrf.mxu0
      %v1267 = vadd.f32 %v1218, %v1266
      %1268 = vmatmul.bf16.gmra.mxu0 %v871
      %v1269 = vpop.f32.mrf.mxu0
      %v1270 = vadd.f32 %v1221, %v1269
      %v1271 = vpop.f32.mrf.mxu0
      %v1272 = vadd.f32 %v1223, %v1271
      %1273 = vmatmul.bf16.gmra.mxu0 %v875
      %v1274 = vpop.f32.mrf.mxu0
      %v1275 = vadd.f32 %v1226, %v1274
      %v1276 = vpop.f32.mrf.mxu0
      %v1277 = vadd.f32 %v1228, %v1276
      %1278 = vmatmul.bf16.gmra.mxu0 %v879
      %v1279 = vpop.f32.mrf.mxu0
      %v1280 = vadd.f32 %v1231, %v1279
      %v1281 = vpop.f32.mrf.mxu0
      %v1282 = vadd.f32 %v1233, %v1281
      %1283 = vmatmul.bf16.gmra.mxu0 %v883
      %v1284 = vpop.f32.mrf.mxu0
      %v1285 = vadd.f32 %v1236, %v1284
      %v1286 = vpop.f32.mrf.mxu0
      %v1287 = vadd.f32 %v1238, %v1286
      %1288 = vmatmul.bf16.gmra.mxu0 %v887
      %v1289 = vpop.f32.mrf.mxu0
      %v1290 = vadd.f32 %v1241, %v1289
      %v1291 = vpop.f32.mrf.mxu0
      %v1292 = vadd.f32 %v1243, %v1291
      %1293 = vmatmul.bf16.gmra.mxu0 %v891
      %v1294 = vpop.f32.mrf.mxu0
      %v1295 = vadd.f32 %v1246, %v1294
      %v1296 = vpop.f32.mrf.mxu0
      %v1297 = vadd.f32 %v1248, %v1296
      %1298 = vmatmul.bf16.gmra.mxu0 %v895
      %v1299 = vpop.f32.mrf.mxu0
      %v1300 = vadd.f32 %v1251, %v1299
      %v1301 = vpop.f32.mrf.mxu0
      %v1302 = vadd.f32 %v1253, %v1301
      %1303 = vdwg.mxu0
      %1304 = vmatpush.bf16.msra.mxu0 %v1124
      %1305 = vmatpush.bf16.msra.mxu0 %v1123
      %1306 = vmatpush.bf16.msra.mxu0 %v1122
      %1307 = vmatpush.bf16.msra.mxu0 %v1121
      %1308 = vmatpush.bf16.msra.mxu0 %v1120
      %1309 = vmatpush.bf16.msra.mxu0 %v1119
      %1310 = vmatpush.bf16.msra.mxu0 %v1118
      %1311 = vmatpush.bf16.msra.mxu0 %v1117
      %1312 = vmatmul.bf16.gmra.mxu0 %v868
      %v1313 = vpop.f32.mrf.mxu0
      %v1314 = vadd.f32 %v1265, %v1313
      %v1315 = vpop.f32.mrf.mxu0
      %v1316 = vadd.f32 %v1267, %v1315
      %1317 = vmatmul.bf16.gmra.mxu0 %v872
      %v1318 = vpop.f32.mrf.mxu0
      %v1319 = vadd.f32 %v1270, %v1318
      %v1320 = vpop.f32.mrf.mxu0
      %v1321 = vadd.f32 %v1272, %v1320
      %1322 = vmatmul.bf16.gmra.mxu0 %v876
      %v1323 = vpop.f32.mrf.mxu0
      %v1324 = vadd.f32 %v1275, %v1323
      %v1325 = vpop.f32.mrf.mxu0
      %v1326 = vadd.f32 %v1277, %v1325
      %1327 = vmatmul.bf16.gmra.mxu0 %v880
      %v1328 = vpop.f32.mrf.mxu0
      %v1329 = vadd.f32 %v1280, %v1328
      %v1330 = vpop.f32.mrf.mxu0
      %v1331 = vadd.f32 %v1282, %v1330
      %1332 = vmatmul.bf16.gmra.mxu0 %v884
      %v1333 = vpop.f32.mrf.mxu0
      %v1334 = vadd.f32 %v1285, %v1333
      %v1335 = vpop.f32.mrf.mxu0
      %v1336 = vadd.f32 %v1287, %v1335
      %1337 = vmatmul.bf16.gmra.mxu0 %v888
      %v1338 = vpop.f32.mrf.mxu0
      %v1339 = vadd.f32 %v1290, %v1338
      %v1340 = vpop.f32.mrf.mxu0
      %v1341 = vadd.f32 %v1292, %v1340
      %1342 = vmatmul.bf16.gmra.mxu0 %v892
      %v1343 = vpop.f32.mrf.mxu0
      %v1344 = vadd.f32 %v1295, %v1343
      %v1345 = vpop.f32.mrf.mxu0
      %v1346 = vadd.f32 %v1297, %v1345
      %1347 = vmatmul.bf16.gmra.mxu0 %v896
      %v1348 = vpop.f32.mrf.mxu0
      %v1349 = vadd.f32 %v1300, %v1348
      %v1350 = vpop.f32.mrf.mxu0
      %v1351 = vadd.f32 %v1302, %v1350
      %1352 = vdwg.mxu0
      %vm1353 = vcmask 64512
      %1354 = vst.msk [vmem:[%s226] sm:$0xff] %vm1353, %v1314
      %1355 = vst.msk [vmem:[%s226 + $0x8] sm:$0xff] %vm1353, %v1316
      %1356 = vst.msk [vmem:[%s226 + $0x10] sm:$0xff] %vm1353, %v1319
      %1357 = vst.msk [vmem:[%s226 + $0x18] sm:$0xff] %vm1353, %v1321
      %1358 = vst.msk [vmem:[%s226 + $0x20] sm:$0xff] %vm1353, %v1324
      %1359 = vst.msk [vmem:[%s226 + $0x28] sm:$0xff] %vm1353, %v1326
      %1360 = vst.msk [vmem:[%s226 + $0x30] sm:$0xff] %vm1353, %v1329
      %1361 = vst.msk [vmem:[%s226 + $0x38] sm:$0xff] %vm1353, %v1331
      %1362 = vst.msk [vmem:[%s226 + $0x40] sm:$0xff] %vm1353, %v1334
      %1363 = vst.msk [vmem:[%s226 + $0x48] sm:$0xff] %vm1353, %v1336
      %1364 = vst.msk [vmem:[%s226 + $0x50] sm:$0xff] %vm1353, %v1339
      %1365 = vst.msk [vmem:[%s226 + $0x58] sm:$0xff] %vm1353, %v1341
      %1366 = vst.msk [vmem:[%s226 + $0x60] sm:$0xff] %vm1353, %v1344
      %1367 = vst.msk [vmem:[%s226 + $0x68] sm:$0xff] %vm1353, %v1346
      %1368 = vst.msk [vmem:[%s226 + $0x70] sm:$0xff] %vm1353, %v1349
      %1369 = vst.msk [vmem:[%s226 + $0x78] sm:$0xff] %vm1353, %v1351
      %s1370 = smul.u32 16, %s16
      %p1371 = scmp.lt.s32.totalorder %s1370, 31
      %s1372 = scalar_select %p1371, %s1370, 31
      %s1373 = smul.addr %s1372, 8
      %s1374 = scalar_lea.vmem %s5, %s1373
      // Predicated region
      $region41: #{dqn_forward.1} parent=39 // pred_check
        %p1375 = pneg %p144
      $region42: #{dqn_forward.1} parent=39 // pred_check_branch
        %1377 = sbr.rel (%p1375) target = $region44
      $region43: #{dqn_forward.1} parent=39 // pred_region
        %s1378 = smul.u32 16, %s16
      $region44: #{dqn_forward.1} parent=39 // pred_fallthru
        _
    $region40: #{dqn_forward.1} parent=5 // pred_fallthru
      _
    %p1379 = scmp.le.s32.totalorder 2, %s11
    // Predicated region
    $region45: #{dqn_forward.1} parent=5 // pred_check
      %p1380 = pneg %p1379
    $region46: #{dqn_forward.1} parent=5 // pred_check_branch
      %1382 = sbr.rel (%p1380) target = $region48
    $region47: #{dqn_forward.1} parent=5 // pred_region
      %s1383 = ssub.s32 %s11, 2
      // Predicated region
      $region49: #{dqn_forward.1} parent=47 // pred_check
        %p1384 = pneg %p150
      $region50: #{dqn_forward.1} parent=47 // pred_check_branch
        %1386 = sbr.rel (%p1384) target = $region52
      $region51: #{dqn_forward.1} parent=47 // pred_region
        %s1387 = smul.u32 16, %s17
        %p1388 = scmp.lt.s32.totalorder %s1387, 31
        %s1389 = scalar_select %p1388, %s1387, 31
        %s1390 = smul.addr %s1389, 8
        %s1391 = scalar_lea.vmem %s5, %s1390
      $region52: #{dqn_forward.1} parent=47 // pred_fallthru
        _
    $region48: #{dqn_forward.1} parent=5 // pred_fallthru
      _
  $region6: #{dqn_forward.1} parent=0 // loop_footer
    %s15 = sadd.s32 1, %s11
  $region7: #{dqn_forward.1} parent=0 // loop_footer_branch
    %10 = sbr.rel target = $region3
  $region8: #{dqn_forward.1} parent=0 // loop_exit
    _

</llo_original>
